<compile_context>
chip_gen: v7x
topology: tpu7x:2x2x1
jax: 0.10.0
libtpu: 0.0.40
codegen_flags: <defaults>
</compile_context>

<pallas_src>
import functools

import jax
import jax.numpy as jnp
from jax.experimental import pallas as pl
from jax.experimental.pallas import tpu as pltpu


def _layernorm2d_kernel(x_ref, w_ref, b_ref, o_ref, *, eps, inv_c):
    # x_ref: (1, C, T)   -- C on sublanes, spatial tile T on lanes (lane-dense).
    # w_ref / b_ref: (1, C, 1) -- broadcast over the spatial (lane) axis.
    x = x_ref[...].astype(jnp.float32)
    # Fused single pass: channel-axis sum and sum-of-squares together.
    s1 = jnp.sum(x, axis=1, keepdims=True)            # (1, 1, T)
    s2 = jnp.sum(x * x, axis=1, keepdims=True)        # (1, 1, T)
    mu = s1 * inv_c
    var = jnp.maximum(s2 * inv_c - mu * mu, 0.0)      # biased variance (matches .mean)
    inv = jax.lax.rsqrt(var + eps)                    # eps inside sqrt, like the ref
    w = w_ref[...].astype(jnp.float32)                # (1, C, 1)
    b = b_ref[...].astype(jnp.float32)
    o_ref[...] = (w * ((x - mu) * inv) + b).astype(o_ref.dtype)


def _tpu_budget():
    """(target_block_bytes, vmem_limit_bytes, min_total_grid_blocks) per TPU gen."""
    kind = ""
    try:
        kind = jax.devices()[0].device_kind.lower()
    except Exception:
        pass
    if "v7" in kind or "tpu7" in kind:
        # v7x: 64 MiB physical VMEM, 2 TensorCores/chip -> want >= 2 grid blocks.
        return 3 << 20, 48 << 20, 2
    if "v5 lite" in kind or "v5e" in kind or "v5lite" in kind:
        # v5e: 16 MiB default scoped VMEM (128 MiB physical); modest blocks,
        # explicitly raised scoped limit.
        return 2 << 20, 64 << 20, 1
    # v6e (and default): 128 MiB physical VMEM, lots of headroom.
    return 4 << 20, 64 << 20, 1


def _pick_spatial_tile(hw, c, itemsize, target_block_bytes, min_spatial_blocks):
    """Pick a lane-dense spatial tile (multiple of 128, or the full extent)."""
    bytes_per_col = max(1, c * itemsize)
    if hw <= 128:
        # Tiny spatial extent: one full-extent block per image (block dim ==
        # array dim satisfies the layout rule even when hw % 128 != 0).
        return hw
    # Largest multiple-of-128 tile within the per-block byte budget (no
    # artificial lane cap -- the byte budget alone decides).
    cap = max(128, (target_block_bytes // bytes_per_col) // 128 * 128)
    full_bytes = hw * bytes_per_col
    if (min_spatial_blocks <= 1 and hw % 128 != 0
            and full_bytes <= 2 * target_block_bytes):
        # Awkward mid-size extent: take the whole spatial axis as one block so
        # the store stays unmasked instead of paying a ragged masked tail.
        return hw
    tile = min(cap, (hw // 128) * 128)
    if min_spatial_blocks > 1:
        # Megacore (v7x, 2 TCs): split the spatial axis ~evenly so every core
        # gets a block even when N == 1.
        even = ((-(-hw // min_spatial_blocks)) + 127) // 128 * 128
        tile = max(128, min(tile, even))
    return tile


def layernorm2d(x, weight, bias, eps=1e-6, *, target_block_bytes=None,
                min_spatial_blocks=None):
    """x: (N, C, H, W) array.  weight, bias: (C,).  Returns (N, C, H, W)."""
    N, C, H, W = x.shape
    HW = H * W

    tgt, vmem_limit, min_total = _tpu_budget()
    if target_block_bytes is None:
        target_block_bytes = tgt
    if min_spatial_blocks is None:
        min_spatial_blocks = -(-min_total // N)   # ensure N * S >= min_total

    # Native NCHW: merge H and W (metadata-only reshape, no HBM traffic).
    x3 = x.reshape(N, C, HW)
    w3 = weight.reshape(1, C, 1)
    b3 = bias.reshape(1, C, 1)

    tile_hw = _pick_spatial_tile(HW, C, jnp.dtype(x.dtype).itemsize,
                                 target_block_bytes, min_spatial_blocks)
    # cdiv grid: a ragged last tile reads unspecified lanes (never contaminates
    # valid columns -- the reduction is per-column) and its OOB writes are
    # dropped.  No jnp.pad / post-slice HBM passes.
    grid = (N, pl.cdiv(HW, tile_hw))

    out3 = pl.pallas_call(
        functools.partial(_layernorm2d_kernel, eps=eps, inv_c=1.0 / C),
        out_shape=jax.ShapeDtypeStruct((N, C, HW), x.dtype),
        grid_spec=pltpu.PrefetchScalarGridSpec(
            num_scalar_prefetch=0,
            grid=grid,
            in_specs=[
                pl.BlockSpec((1, C, tile_hw), lambda n, s: (n, 0, s)),
                pl.BlockSpec((1, C, 1), lambda n, s: (0, 0, 0)),
                pl.BlockSpec((1, C, 1), lambda n, s: (0, 0, 0)),
            ],
            out_specs=pl.BlockSpec((1, C, tile_hw), lambda n, s: (n, 0, s)),
        ),
        compiler_params=pltpu.CompilerParams(
            dimension_semantics=("parallel", "parallel"),
            vmem_limit_bytes=vmem_limit,
        ),
    )(x3, w3, b3)

    return out3.reshape(N, C, H, W)


def layernorm2d_ref(x, weight, bias, eps=1e-6):
    # Pure-JAX reference mirroring the PyTorch forward exactly (f32 math).
    xf = x.astype(jnp.float32)
    mu = jnp.mean(xf, axis=1, keepdims=True)
    var = jnp.mean((xf - mu) ** 2, axis=1, keepdims=True)
    y = (xf - mu) / jnp.sqrt(var + eps)
    return (weight.astype(jnp.float32).reshape(1, -1, 1, 1) * y
            + bias.astype(jnp.float32).reshape(1, -1, 1, 1))


if __name__ == "__main__":
    key = jax.random.PRNGKey(0)
    keys = jax.random.split(key, 9)

    # Test 1: module-sized f32 input (matches the spec's small shapes).
    N, C, H, W = 2, 4, 16, 16
    x = jax.random.normal(keys[0], (N, C, H, W), dtype=jnp.float32)
    weight = 1.0 + 0.1 * jax.random.normal(keys[1], (C,), dtype=jnp.float32)
    bias = 0.1 * jax.random.normal(keys[2], (C,), dtype=jnp.float32)

    out = jax.block_until_ready(layernorm2d(x, weight, bias, eps=1e-6))
    ref = layernorm2d_ref(x, weight, bias, eps=1e-6)
    assert out.shape == (N, C, H, W)
    assert jnp.allclose(out, ref, atol=1e-5, rtol=1e-5), "f32 mismatch vs reference"

    # Test 2: realistic channel count + bf16 input (full-extent block path).
    N2, C2, H2, W2 = 2, 128, 8, 8
    x2 = jax.random.normal(keys[3], (N2, C2, H2, W2), dtype=jnp.bfloat16)
    wt2 = 1.0 + 0.1 * jax.random.normal(keys[4], (C2,), dtype=jnp.float32)
    bs2 = 0.1 * jax.random.normal(keys[5], (C2,), dtype=jnp.float32)

    out2 = jax.block_until_ready(layernorm2d(x2, wt2, bs2, eps=1e-6))
    ref2 = layernorm2d_ref(x2, wt2, bs2, eps=1e-6)
    assert out2.shape == (N2, C2, H2, W2)
    assert out2.dtype == jnp.bfloat16
    assert jnp.allclose(out2.astype(jnp.float32), ref2, atol=2e-2, rtol=2e-2), \
        "bf16 mismatch vs reference"

    # Test 3: ragged spatial extent with a forced-small block budget, so the
    # cdiv grid + clipped tail-block path (OOB reads / masked writes) and the
    # >=2 spatial-blocks megacore path are both exercised and verified.
    N3, C3, H3, W3 = 1, 8, 12, 25          # HW = 300 -> tiles of 128 + 44-col tail
    x3 = jax.random.normal(keys[6], (N3, C3, H3, W3), dtype=jnp.float32)
    wt3 = 1.0 + 0.1 * jax.random.normal(keys[7], (C3,), dtype=jnp.float32)
    bs3 = 0.1 * jax.random.normal(keys[8], (C3,), dtype=jnp.float32)

    out3 = jax.block_until_ready(
        layernorm2d(x3, wt3, bs3, eps=1e-6,
                    target_block_bytes=4096, min_spatial_blocks=2))
    ref3 = layernorm2d_ref(x3, wt3, bs3, eps=1e-6)
    assert out3.shape == (N3, C3, H3, W3)
    assert jnp.allclose(out3, ref3, atol=1e-5, rtol=1e-5), "ragged-tail mismatch"

    print("KERNEL_OK")
</pallas_src>

<mosaic_0001>
module attributes {stable_mosaic.version = 11 : i64} {
  func.func @_layernorm2d_kernel(%arg0: i32, %arg1: i32, %arg2: memref<1x4x256xf32, #tpu.memory_space<vmem>>, %arg3: memref<1x4x1xf32, #tpu.memory_space<vmem>>, %arg4: memref<1x4x1xf32, #tpu.memory_space<vmem>>, %arg5: memref<1x4x256xf32, #tpu.memory_space<vmem>>) attributes {dimension_semantics = [#tpu.dimension_semantics<parallel>, #tpu.dimension_semantics<parallel>], iteration_bounds = array<i64: 2, 1>, scalar_prefetch = 0 : i64, scratch_operands = 0 : i64, tpu.core_type = #tpu.core_type<tc>, window_params = [{transform_indices = @transform_0, window_bounds = array<i64: 1, 4, 256>}, {pipeline_mode = #tpu.pipeline_mode<synchronous>, transform_indices = @transform_1, window_bounds = array<i64: 1, 4, 1>}, {pipeline_mode = #tpu.pipeline_mode<synchronous>, transform_indices = @transform_2, window_bounds = array<i64: 1, 4, 1>}, {transform_indices = @transform_3, window_bounds = array<i64: 1, 4, 256>}]} {
    %c0 = arith.constant 0 : index
    %c0_0 = arith.constant 0 : index
    %c0_1 = arith.constant 0 : index
    %0 = vector.load %arg2[%c0, %c0_0, %c0_1] : memref<1x4x256xf32, #tpu.memory_space<vmem>>, vector<1x4x256xf32>
    %cst = arith.constant dense<0.000000e+00> : vector<1x256xf32>
    %1 = vector.multi_reduction <add>, %0, %cst [1] : vector<1x4x256xf32> to vector<1x256xf32>
    %2 = vector.shape_cast %1 : vector<1x256xf32> to vector<1x1x256xf32>
    %3 = arith.mulf %0, %0 : vector<1x4x256xf32>
    %cst_2 = arith.constant dense<0.000000e+00> : vector<1x256xf32>
    %4 = vector.multi_reduction <add>, %3, %cst_2 [1] : vector<1x4x256xf32> to vector<1x256xf32>
    %5 = vector.shape_cast %4 : vector<1x256xf32> to vector<1x1x256xf32>
    %cst_3 = arith.constant 2.500000e-01 : f32
    %6 = vector.broadcast %cst_3 : f32 to vector<1x1x256xf32>
    %7 = arith.mulf %2, %6 : vector<1x1x256xf32>
    %cst_4 = arith.constant 2.500000e-01 : f32
    %8 = vector.broadcast %cst_4 : f32 to vector<1x1x256xf32>
    %9 = arith.mulf %5, %8 : vector<1x1x256xf32>
    %10 = arith.mulf %7, %7 : vector<1x1x256xf32>
    %11 = arith.subf %9, %10 : vector<1x1x256xf32>
    %cst_5 = arith.constant 0.000000e+00 : f32
    %12 = vector.broadcast %cst_5 : f32 to vector<1x1x256xf32>
    %13 = arith.maximumf %11, %12 : vector<1x1x256xf32>
    %cst_6 = arith.constant 9.99999997E-7 : f32
    %14 = vector.broadcast %cst_6 : f32 to vector<1x1x256xf32>
    %15 = arith.addf %13, %14 : vector<1x1x256xf32>
    %16 = math.rsqrt %15 : vector<1x1x256xf32>
    %c0_7 = arith.constant 0 : index
    %c0_8 = arith.constant 0 : index
    %c0_9 = arith.constant 0 : index
    %17 = vector.load %arg3[%c0_7, %c0_8, %c0_9] : memref<1x4x1xf32, #tpu.memory_space<vmem>>, vector<1x4x1xf32>
    %c0_10 = arith.constant 0 : index
    %c0_11 = arith.constant 0 : index
    %c0_12 = arith.constant 0 : index
    %18 = vector.load %arg4[%c0_10, %c0_11, %c0_12] : memref<1x4x1xf32, #tpu.memory_space<vmem>>, vector<1x4x1xf32>
    %19 = vector.broadcast %7 : vector<1x1x256xf32> to vector<1x4x256xf32>
    %20 = arith.subf %0, %19 : vector<1x4x256xf32>
    %21 = vector.broadcast %16 : vector<1x1x256xf32> to vector<1x4x256xf32>
    %22 = arith.mulf %20, %21 : vector<1x4x256xf32>
    %23 = vector.broadcast %17 : vector<1x4x1xf32> to vector<1x4x256xf32>
    %24 = arith.mulf %23, %22 : vector<1x4x256xf32>
    %25 = vector.broadcast %18 : vector<1x4x1xf32> to vector<1x4x256xf32>
    %26 = arith.addf %24, %25 : vector<1x4x256xf32>
    %c0_13 = arith.constant 0 : index
    %c0_14 = arith.constant 0 : index
    %c0_15 = arith.constant 0 : index
    %27 = vector.load %arg5[%c0_13, %c0_14, %c0_15] : memref<1x4x256xf32, #tpu.memory_space<vmem>>, vector<1x4x256xf32>
    tpu.vector_store %arg5[%c0_13, %c0_14, %c0_15], %26 {strides = array<i32>} : memref<1x4x256xf32, #tpu.memory_space<vmem>>, vector<1x4x256xf32>,
    return
  }
  func.func @transform_0(%arg0: i32, %arg1: i32) -> (i32, i32, i32) {
    %c0_i32 = arith.constant 0 : i32
    %c0_i32_0 = arith.constant 0 : i32
    return %arg0, %c0_i32, %arg1 : i32, i32, i32
  }
  func.func @transform_1(%arg0: i32, %arg1: i32) -> (i32, i32, i32) {
    %c0_i32 = arith.constant 0 : i32
    %c0_i32_0 = arith.constant 0 : i32
    %c0_i32_1 = arith.constant 0 : i32
    %c0_i32_2 = arith.constant 0 : i32
    return %c0_i32, %c0_i32_0, %c0_i32_1 : i32, i32, i32
  }
  func.func @transform_2(%arg0: i32, %arg1: i32) -> (i32, i32, i32) {
    %c0_i32 = arith.constant 0 : i32
    %c0_i32_0 = arith.constant 0 : i32
    %c0_i32_1 = arith.constant 0 : i32
    %c0_i32_2 = arith.constant 0 : i32
    return %c0_i32, %c0_i32_0, %c0_i32_1 : i32, i32, i32
  }
  func.func @transform_3(%arg0: i32, %arg1: i32) -> (i32, i32, i32) {
    %c0_i32 = arith.constant 0 : i32
    %c0_i32_0 = arith.constant 0 : i32
    return %arg0, %c0_i32, %arg1 : i32, i32, i32
  }
}

</mosaic_0001>

<llo_original>
// kernel: tpu_custom_call.1
$region0: #{tpu_custom_call.1}
  #allocation0 [shape = 'u32[]', space=smem, size = 0x4, offset = 0x4, fixed_abs, tag = 'smem constant byte address 0x4 - core index']
  #allocation1 [shape = 'u32[144,128]{1,0:T(1,128)}', space=vmem, size = 0x12000, scoped, tag = 'internal scratch']
  %s0 = inlined_call_operand.hbm [shape: f32[2,4,256], index: 0, kind: input, shape index: {}]
  %s1 = inlined_call_operand.hbm [shape: f32[1,4,1], index: 1, kind: input, shape index: {}]
  %s2 = inlined_call_operand.hbm [shape: f32[1,4,1], index: 2, kind: input, shape index: {}]
  %s3 = inlined_call_operand.hbm [shape: f32[2,4,256], index: 3, kind: output, shape index: {}]
  %s4 = sld [smem:[#allocation0]]
  $region57: #{tpu_custom_call.1} parent=0
    _
  %s6 = ssub.s32 1, %s4
  %s7 = scalar_select 0, %s6, %s4
  $region1: #{tpu_custom_call.1} parent=0
    #allocation2 [shape = 'u8[8192]{0}', space=vmem, size = 0x2000, scoped, tag = 'input window, operand 0']
    #allocation3 [shape = 's32[2]{0}', space=sflag, size = 0x8, scoped, tag = 'scoped memory for tpu_custom_call.1']
    #allocation4 [shape = 's32[2]{0}', space=sflag, size = 0x8, scoped, tag = 'scoped memory for tpu_custom_call.1']
    #allocation5 [shape = 'u8[2048]{0}', space=vmem, size = 0x800, scoped, tag = 'input window, operand 1, single buffered']
    #allocation6 [shape = 's32[1]{0}', space=sflag, size = 0x4, scoped, tag = 'scoped memory for tpu_custom_call.1']
    #allocation7 [shape = 'u8[2048]{0}', space=vmem, size = 0x800, scoped, tag = 'input window, operand 2, single buffered']
    #allocation8 [shape = 'u8[8192]{0}', space=vmem, size = 0x2000, scoped, tag = 'output window, operand 0']
    %8 = vsyncpa [#allocation3], 0
    %s9 = scalar_lea.sflag [#allocation3], 1
    %10 = vsyncpa %s9, 0
    %11 = vsyncpa [#allocation6], 0
    %12 = vsyncpa [#allocation4], 0
    %s13 = scalar_lea.sflag [#allocation4], 1
    %14 = vsyncpa %s13, 0
    loop: start=0, step=1, limit=4
    $region2: #{tpu_custom_call.1} parent=1 // loop_pre_header
      _
    $region3: #{tpu_custom_call.1} parent=1 // loop_header
      %s16 = sphi 0, %s20
      %p17 = scmp.ge.s32.totalorder %s16, 4
      %s23 = sphi 0, %s35
      %s24 = sphi 0, %s31
      %s25 = sphi 0, %s23
      %s26 = sphi 0, %s24
      %s27 = sphi 0, %s25
      %s28 = sphi 0, %s26
      %s40 = sphi 0, %s42
      %s43 = sphi 0, %s40
      %s44 = sphi 0, %s43
      %s60 = sphi 0, %s44
      %s64 = sphi 0, %s64
      %s66 = sphi 0, %s64
      %s67 = sphi 0, %s66
      %s81 = sphi 0, %s67
      %s85 = sphi 0, %s85
      %s87 = sphi 0, %s85
      %s88 = sphi 0, %s87
      %s102 = sphi 0, %s88
      %s110 = sphi 0, %s112
      %s113 = sphi 0, %s110
      %s114 = sphi 0, %s113
      %s130 = sphi 0, %s114
    $region4: #{tpu_custom_call.1} parent=1 // loop_header_branch
      %19 = sbr.rel (%p17) target = $region8
    $region5: #{tpu_custom_call.1} parent=1 // loop_body
      %s21 = ssub.s32 %s16, 1
      %s22 = ssub.s32 %s16, 2
      %s29 = sadd.s32 1, %s24
      %p30 = scmp.ge.s32.totalorder %s29, 1
      %s31 = scalar_select %p30, 0, %s29
      %s32 = sadd.s32 1, %s23
      %s33 = scalar_select %p30, %s32, %s23
      %p34 = scmp.ge.s32.totalorder %s33, 2
      %s35 = scalar_select %p34, 0, %s33
      %s36 = ssub.s32 %s23, %s35
      %s37 = ssub.s32 %s24, %s31
      %s38 = sor.u32 %s36, %s37
      %p39 = scmp.eq.s32.totalorder %s38, 0
      %s41 = sadd.s32 %s40, 1
      %s42 = scalar_select %p39, %s40, %s41
      %p45 = pneg %p39
      %p46 = scmp.eq.s32.totalorder %s16, 1
      %p47 = por %p45, %p46
      %p48 = scmp.ne.s32.totalorder %s40, %s43
      %p49 = scmp.eq.s32.totalorder %s16, 0
      %p50 = por %p48, %p49
      %p51 = scmp.ne.s32.totalorder %s40, %s43
      %p52 = scmp.eq.s32.totalorder %s21, 1
      %p53 = por %p51, %p52
      %p54 = scmp.ne.s32.totalorder %s43, %s44
      %p55 = scmp.eq.s32.totalorder %s21, 0
      %p56 = por %p54, %p55
      %p57 = scmp.ne.s32.totalorder %s43, %s44
      %p58 = scmp.eq.s32.totalorder %s22, 1
      %p59 = por %p57, %p58
      %p61 = scmp.ne.s32.totalorder %s44, %s60
      %p62 = scmp.eq.s32.totalorder %s22, 0
      %p63 = por %p61, %p62
      %s65 = sadd.s32 %s64, 1
      %p68 = scmp.eq.s32.totalorder %s16, 1
      %p69 = scmp.ne.s32.totalorder %s64, %s66
      %p70 = scmp.eq.s32.totalorder %s16, 0
      %p71 = por %p69, %p70
      %p72 = scmp.ne.s32.totalorder %s64, %s66
      %p73 = scmp.eq.s32.totalorder %s21, 1
      %p74 = por %p72, %p73
      %p75 = scmp.ne.s32.totalorder %s66, %s67
      %p76 = scmp.eq.s32.totalorder %s21, 0
      %p77 = por %p75, %p76
      %p78 = scmp.ne.s32.totalorder %s66, %s67
      %p79 = scmp.eq.s32.totalorder %s22, 1
      %p80 = por %p78, %p79
      %p82 = scmp.ne.s32.totalorder %s67, %s81
      %p83 = scmp.eq.s32.totalorder %s22, 0
      %p84 = por %p82, %p83
      %s86 = sadd.s32 %s85, 1
      %p89 = scmp.eq.s32.totalorder %s16, 1
      %p90 = scmp.ne.s32.totalorder %s85, %s87
      %p91 = scmp.eq.s32.totalorder %s16, 0
      %p92 = por %p90, %p91
      %p93 = scmp.ne.s32.totalorder %s85, %s87
      %p94 = scmp.eq.s32.totalorder %s21, 1
      %p95 = por %p93, %p94
      %p96 = scmp.ne.s32.totalorder %s87, %s88
      %p97 = scmp.eq.s32.totalorder %s21, 0
      %p98 = por %p96, %p97
      %p99 = scmp.ne.s32.totalorder %s87, %s88
      %p100 = scmp.eq.s32.totalorder %s22, 1
      %p101 = por %p99, %p100
      %p103 = scmp.ne.s32.totalorder %s88, %s102
      %p104 = scmp.eq.s32.totalorder %s22, 0
      %p105 = por %p103, %p104
      %s106 = ssub.s32 %s23, %s35
      %s107 = ssub.s32 %s24, %s31
      %s108 = sor.u32 %s106, %s107
      %p109 = scmp.eq.s32.totalorder %s108, 0
      %s111 = sadd.s32 %s110, 1
      %s112 = scalar_select %p109, %s110, %s111
      %p115 = pneg %p109
      %p116 = scmp.eq.s32.totalorder %s16, 1
      %p117 = por %p115, %p116
      %p118 = scmp.ne.s32.totalorder %s110, %s113
      %p119 = scmp.eq.s32.totalorder %s16, 0
      %p120 = por %p118, %p119
      %p121 = scmp.ne.s32.totalorder %s110, %s113
      %p122 = scmp.eq.s32.totalorder %s21, 1
      %p123 = por %p121, %p122
      %p124 = scmp.ne.s32.totalorder %s113, %s114
      %p125 = scmp.eq.s32.totalorder %s21, 0
      %p126 = por %p124, %p125
      %p127 = scmp.ne.s32.totalorder %s113, %s114
      %p128 = scmp.eq.s32.totalorder %s22, 1
      %p129 = por %p127, %p128
      %p131 = scmp.ne.s32.totalorder %s114, %s130
      %p132 = scmp.eq.s32.totalorder %s22, 0
      %p133 = por %p131, %p132
      %p134 = scmp.le.s32.totalorder 1, %s16
      %p135 = scmp.lt.s32.totalorder %s16, 3
      %p136 = pnand %p134, %p135
      %p137 = pneg %p136
      // Predicated region
      $region9: #{tpu_custom_call.1} parent=5 // pred_check
        _
      $region10: #{tpu_custom_call.1} parent=5 // pred_check_branch
        %139 = sbr.rel (%p136) target = $region12
      $region11: #{tpu_custom_call.1} parent=5 // pred_region
        %s140 = ssub.s32 %s16, 1
        // Predicated region
        $region13: #{tpu_custom_call.1} parent=11 // pred_check
          %p141 = pneg %p77
        $region14: #{tpu_custom_call.1} parent=11 // pred_check_branch
          %143 = sbr.rel (%p141) target = $region16
        $region15: #{tpu_custom_call.1} parent=11 // pred_region
          %s145 = ssub.s32 64, 64
          %146 = vsyncadd [#allocation6], %s145
          %s148 = sshll.u32 [#allocation5], 4
          %s149 = int_to_ptr.vmem [resolvable:$true] %s148
          %151 = dma.hbm_to_vmem [thread:$0]  %s1, 64, %s149, [#allocation6]
        $region16: #{tpu_custom_call.1} parent=11 // pred_fallthru
          _
        // Predicated region
        $region17: #{tpu_custom_call.1} parent=11 // pred_check
          %p152 = pneg %p98
        $region18: #{tpu_custom_call.1} parent=11 // pred_check_branch
          %154 = sbr.rel (%p152) target = $region20
        $region19: #{tpu_custom_call.1} parent=11 // pred_region
          %s156 = ssub.s32 64, 64
          %157 = vsyncadd [#allocation6], %s156
          %s159 = sshll.u32 [#allocation7], 4
          %s160 = int_to_ptr.vmem [resolvable:$true] %s159
          %162 = dma.hbm_to_vmem [thread:$0]  %s2, 64, %s160, [#allocation6]
        $region20: #{tpu_custom_call.1} parent=11 // pred_fallthru
          _
      $region12: #{tpu_custom_call.1} parent=5 // pred_fallthru
        _
      %p163 = scmp.lt.s32.totalorder %s16, 2
      // Predicated region
      $region21: #{tpu_custom_call.1} parent=5 // pred_check
        %p164 = pneg %p163
      $region22: #{tpu_custom_call.1} parent=5 // pred_check_branch
        %166 = sbr.rel (%p164) target = $region24
      $region23: #{tpu_custom_call.1} parent=5 // pred_region
        // Predicated region
        $region25: #{tpu_custom_call.1} parent=23 // pred_check
          %p167 = pneg %p50
        $region26: #{tpu_custom_call.1} parent=23 // pred_check_branch
          %169 = sbr.rel (%p167) target = $region28
        $region27: #{tpu_custom_call.1} parent=23 // pred_region
          %s170 = sand.u32 %s40, 1
          %s171 = scalar_lea.sflag [#allocation3], %s170
          %s172 = sand.u32 %s40, 1
          %s173 = smul.addr %s172, 8
          %s174 = scalar_lea.vmem [#allocation2], %s173
          %s175 = smul.u32 2, %s24
          %s177 = ssub.s32 128, 128
          %178 = vsyncadd %s171, %s177
          %s179 = smul.addr %s23, 2
          %s180 = sadd.s32 %s175, %s179
          %s181 = smul.addr %s180, 64
          %s182 = scalar_lea.hbm %s0, %s181
          %s184 = sshll.u32 %s174, 4
          %s185 = int_to_ptr.vmem [resolvable:$true] %s184
          %187 = dma.hbm_to_vmem [thread:$0]  %s182, 128, %s185, %s171
        $region28: #{tpu_custom_call.1} parent=23 // pred_fallthru
          _
      $region24: #{tpu_custom_call.1} parent=5 // pred_fallthru
        _
      %p188 = scmp.le.s32.totalorder 1, %s16
      %p189 = scmp.lt.s32.totalorder %s16, 3
      %p190 = pnand %p188, %p189
      %p191 = pneg %p190
      // Predicated region
      $region29: #{tpu_custom_call.1} parent=5 // pred_check
        _
      $region30: #{tpu_custom_call.1} parent=5 // pred_check_branch
        %193 = sbr.rel (%p190) target = $region32
      $region31: #{tpu_custom_call.1} parent=5 // pred_region
        %s194 = ssub.s32 %s16, 1
        %s195 = sand.u32 %s43, 1
        %s196 = scalar_lea.sflag [#allocation3], %s195
        %s197 = sand.u32 %s43, 1
        %s198 = smul.addr %s197, 8
        %s199 = scalar_lea.vmem [#allocation2], %s198
        // Predicated region
        $region33: #{tpu_custom_call.1} parent=31 // pred_check
          %p200 = pneg %p56
        $region34: #{tpu_custom_call.1} parent=31 // pred_check_branch
          %202 = sbr.rel (%p200) target = $region36
        $region35: #{tpu_custom_call.1} parent=31 // pred_region
          %203 = dma.done %s196, 128
        $region36: #{tpu_custom_call.1} parent=31 // pred_fallthru
          _
        // Predicated region
        $region37: #{tpu_custom_call.1} parent=31 // pred_check
          %p204 = pneg %p77
        $region38: #{tpu_custom_call.1} parent=31 // pred_check_branch
          %206 = sbr.rel (%p204) target = $region40
        $region39: #{tpu_custom_call.1} parent=31 // pred_region
          %207 = dma.done [#allocation6], 64
        $region40: #{tpu_custom_call.1} parent=31 // pred_fallthru
          _
        // Predicated region
        $region41: #{tpu_custom_call.1} parent=31 // pred_check
          %p208 = pneg %p98
        $region42: #{tpu_custom_call.1} parent=31 // pred_check_branch
          %210 = sbr.rel (%p208) target = $region44
        $region43: #{tpu_custom_call.1} parent=31 // pred_region
          %211 = dma.done [#allocation6], 64
        $region44: #{tpu_custom_call.1} parent=31 // pred_fallthru
          _
        %s212 = sand.u32 %s43, 1
        %s213 = scalar_lea.sflag [#allocation3], %s212
        %s214 = sand.u32 %s43, 1
        %s215 = smul.addr %s214, 8
        %s216 = scalar_lea.vmem [#allocation2], %s215
        %p217 = pneg %p56
        %p218 = pneg %p53
        %p219 = pneg %p77
        %p220 = pneg %p74
        %p221 = pneg %p98
        %p222 = pneg %p95
        %p223 = pneg %p126
        %p224 = pneg %p123
        %s225 = sand.u32 %s113, 1
        %s226 = scalar_lea.sflag [#allocation4], %s225
        %s227 = sand.u32 %s113, 1
        %s228 = smul.addr %s227, 8
        %s229 = scalar_lea.vmem [#allocation8], %s228
        %s230 = smul.u32 2, %s26
        %s231 = smul.u32 2, %s26
        %v232 = vld [vmem:[%s199] sm:$0xff]
        %v234 = vcombine.high %v232, %v232
        %vm236 = vcmask 1043456
        %v237 = vsel %vm236, %v232, 0.0
        %v238 = vrot.slane %v237, 4
        %v239 = vadd.f32 %v237, %v238
        %v240 = vrot.slane %v239, 2
        %v241 = vadd.f32 %v239, %v240
        %v242 = vrot.slane %v241, 1
        %v243 = vadd.f32 %v241, %v242
        %v244 = vsel %vm236, %v234, 0.0
        %v245 = vrot.slane %v244, 4
        %v246 = vadd.f32 %v244, %v245
        %v247 = vrot.slane %v246, 2
        %v248 = vadd.f32 %v246, %v247
        %v249 = vrot.slane %v248, 1
        %v250 = vadd.f32 %v248, %v249
        %v251 = vmul.f32 %v232, %v232
        %v253 = vcombine.high %v251, %v251
        %v255 = vsel %vm236, %v251, 0.0
        %v256 = vrot.slane %v255, 4
        %v257 = vadd.f32 %v255, %v256
        %v258 = vrot.slane %v257, 2
        %v259 = vadd.f32 %v257, %v258
        %v260 = vrot.slane %v259, 1
        %v261 = vadd.f32 %v259, %v260
        %v262 = vsel %vm236, %v253, 0.0
        %v263 = vrot.slane %v262, 4
        %v264 = vadd.f32 %v262, %v263
        %v265 = vrot.slane %v264, 2
        %v266 = vadd.f32 %v264, %v265
        %v267 = vrot.slane %v266, 1
        %v268 = vadd.f32 %v266, %v267
        %v269 = vmul.f32 %v243, 0.25
        %v270 = vmul.f32 %v250, 0.25
        %v271 = vmul.f32 %v261, 0.25
        %v272 = vmul.f32 %v268, 0.25
        %v273 = vmul.f32 %v269, %v269
        %v274 = vmul.f32 %v270, %v270
        %v275 = vsub.f32 %v271, %v273
        %v276 = vsub.f32 %v272, %v274
        %v277 = vmax.f32 %v275, 0.0
        %v278 = vmax.f32 %v276, 0.0
        %v279 = vadd.f32 %v277, 1e-06
        %v280 = vadd.f32 %v278, 1e-06
        %v281 = vrsqrt.pop %v279
        %v282 = vrsqrt.pop %v280
        %v283 = vld [vmem:[#allocation5] sm:$0xf]
        %v284 = vld [vmem:[#allocation7] sm:$0xf]
        %v287 = vcombine.low %v269, %v270
        %v289 = vsub.f32 %v232, %v287
        %v292 = vcombine.low %v281, %v282
        %v294 = vmul.f32 %v289, %v292
        %296 = vset.pattern.permute.xlu0 0
        %297 = vperm.xlu0 %296, %v283
        %v298 = vpop.permute.xlu0 %297
        %v301 = vcombine.high %v294, %v294
        %v303 = vmul.f32 %v298, %v294
        %v304 = vmul.f32 %v298, %v301
        %306 = vset.pattern.permute.xlu0 0
        %307 = vperm.xlu0 %306, %v284
        %v308 = vpop.permute.xlu0 %307
        %v310 = vadd.f32 %v303, %v308
        %v311 = vadd.f32 %v304, %v308
        %v314 = vcombine.low %v310, %v311
        %316 = vst [vmem:[%s229] sm:$0xff] %v314
        %s317 = sand.u32 %s113, 1
        %s318 = scalar_lea.sflag [#allocation4], %s317
        %s319 = sand.u32 %s113, 1
        %s320 = smul.addr %s319, 8
        %s321 = scalar_lea.vmem [#allocation8], %s320
        // Predicated region
        $region45: #{tpu_custom_call.1} parent=31 // pred_check
          %p322 = pneg %p123
        $region46: #{tpu_custom_call.1} parent=31 // pred_check_branch
          %324 = sbr.rel (%p322) target = $region48
        $region47: #{tpu_custom_call.1} parent=31 // pred_region
          %s325 = smul.u32 2, %s26
          %s327 = ssub.s32 128, 128
          %328 = vsyncadd %s318, %s327
          %s329 = smul.addr %s25, 2
          %s330 = sadd.s32 %s325, %s329
          %s331 = smul.addr %s330, 64
          %s332 = scalar_lea.hbm %s3, %s331
          %s334 = sshll.u32 %s321, 4
          %s335 = int_to_ptr.vmem [resolvable:$true] %s334
          %337 = dma.vmem_to_hbm [thread:$0]  %s335, 128, %s332, %s318
        $region48: #{tpu_custom_call.1} parent=31 // pred_fallthru
          _
      $region32: #{tpu_custom_call.1} parent=5 // pred_fallthru
        _
      %p338 = scmp.le.s32.totalorder 2, %s16
      // Predicated region
      $region49: #{tpu_custom_call.1} parent=5 // pred_check
        %p339 = pneg %p338
      $region50: #{tpu_custom_call.1} parent=5 // pred_check_branch
        %341 = sbr.rel (%p339) target = $region52
      $region51: #{tpu_custom_call.1} parent=5 // pred_region
        %s342 = ssub.s32 %s16, 2
        // Predicated region
        $region53: #{tpu_custom_call.1} parent=51 // pred_check
          %p343 = pneg %p129
        $region54: #{tpu_custom_call.1} parent=51 // pred_check_branch
          %345 = sbr.rel (%p343) target = $region56
        $region55: #{tpu_custom_call.1} parent=51 // pred_region
          %s346 = sand.u32 %s114, 1
          %s347 = scalar_lea.sflag [#allocation4], %s346
          %s348 = sand.u32 %s114, 1
          %s349 = smul.addr %s348, 8
          %s350 = scalar_lea.vmem [#allocation8], %s349
          %351 = dma.done %s347, 128
        $region56: #{tpu_custom_call.1} parent=51 // pred_fallthru
          _
      $region52: #{tpu_custom_call.1} parent=5 // pred_fallthru
        _
    $region6: #{tpu_custom_call.1} parent=1 // loop_footer
      %s20 = sadd.s32 1, %s16
    $region7: #{tpu_custom_call.1} parent=1 // loop_footer_branch
      %15 = sbr.rel target = $region3
    $region8: #{tpu_custom_call.1} parent=1 // loop_exit
      _
    %352 = vsyncpa [#allocation3], 1
    %s353 = scalar_lea.sflag [#allocation3], 1
    %354 = vsyncpa %s353, 1
    %355 = vsyncpa [#allocation6], 1
    %356 = vsyncpa [#allocation4], 1
    %s357 = scalar_lea.sflag [#allocation4], 1
    %358 = vsyncpa %s357, 1

</llo_original>
